<compile_context>
chip_gen: v5e
topology: v5e:2x2
jax: 0.10.0
libtpu: 0.0.40
codegen_flags: <defaults>
</compile_context>

<pallas_src>
import jax
import jax.numpy as jnp
from jax.experimental import pallas as pl
from jax.experimental.pallas import tpu as pltpu

HIDDEN = 16
N_OUT = 3
LANE = 128  # lane-dense padded output width


def mlp_kernel(x_ref, w1_ref, b1_ref, w2_ref, b2_ref, o_ref):
    # fc1: [TB, F] @ [F, 16]  (bf16 operands, f32 accumulate)
    h = jnp.dot(x_ref[...], w1_ref[...], preferred_element_type=jnp.float32)
    # bias + ReLU in f32
    h = jnp.maximum(h + b1_ref[...], 0.0)
    # fc2: [TB, 16] @ [16, 128]  (columns 3..127 are zero padding)
    out = jnp.dot(h.astype(w2_ref.dtype), w2_ref[...],
                  preferred_element_type=jnp.float32)
    out = out + b2_ref[...]
    o_ref[...] = out.astype(o_ref.dtype)


def _round_up(n, m):
    return ((n + m - 1) // m) * m


def activity_model_forward(x, w1, b1, w2, b2, *, tile_b=2048, use_bf16=True):
    """x: [B, F] f32; w1: [F,16]; b1: [16]; w2: [16,3]; b2: [3] -> [B, 3] f32."""
    B, F = x.shape
    b1 = jnp.asarray(b1, jnp.float32).reshape(1, HIDDEN)
    b2 = jnp.asarray(b2, jnp.float32).reshape(1, N_OUT)

    # Lane-dense output: pad fc2 weight/bias to 128 output columns.
    w2_pad = jnp.zeros((HIDDEN, LANE), w2.dtype).at[:, :N_OUT].set(w2)
    b2_pad = jnp.zeros((1, LANE), jnp.float32).at[:, :N_OUT].set(b2)

    # Batch tiling; pad B up to a multiple of the tile (tail rows discarded).
    tb = min(tile_b, _round_up(B, 8))
    B_pad = _round_up(B, tb)
    if B_pad != B:
        x = jnp.pad(x, ((0, B_pad - B), (0, 0)))

    cdtype = jnp.bfloat16 if use_bf16 else jnp.float32
    x_c = x.astype(cdtype)
    w1_c = w1.astype(cdtype)
    w2_c = w2_pad.astype(cdtype)

    grid = (B_pad // tb,)

    flops = 2 * B_pad * F * HIDDEN + 2 * B_pad * HIDDEN * LANE
    bytes_accessed = (x_c.size * x_c.dtype.itemsize
                      + w1_c.size * w1_c.dtype.itemsize
                      + w2_c.size * w2_c.dtype.itemsize
                      + b1.size * 4 + b2_pad.size * 4
                      + B_pad * LANE * 4)

    out_padded = pl.pallas_call(
        mlp_kernel,
        out_shape=jax.ShapeDtypeStruct((B_pad, LANE), jnp.float32),
        grid=grid,
        in_specs=[
            pl.BlockSpec((tb, F), lambda i: (i, 0)),          # x tile
            pl.BlockSpec((F, HIDDEN), lambda i: (0, 0)),      # w1 (resident)
            pl.BlockSpec((1, HIDDEN), lambda i: (0, 0)),      # b1 (resident)
            pl.BlockSpec((HIDDEN, LANE), lambda i: (0, 0)),   # w2 padded (resident)
            pl.BlockSpec((1, LANE), lambda i: (0, 0)),        # b2 padded (resident)
        ],
        out_specs=pl.BlockSpec((tb, LANE), lambda i: (i, 0)),
        compiler_params=pltpu.CompilerParams(
            dimension_semantics=("parallel",)),
        cost_estimate=pl.CostEstimate(
            flops=flops, transcendentals=0, bytes_accessed=bytes_accessed),
    )(x_c, w1_c, b1, w2_c, b2_pad)

    return out_padded[:B, :N_OUT]


def init_params(key, input_size):
    """Deterministic init mimicking nn.Linear's uniform(-1/sqrt(fan_in), 1/sqrt(fan_in))."""
    k1, k2, k3, k4 = jax.random.split(key, 4)
    bound1 = 1.0 / jnp.sqrt(input_size)
    bound2 = 1.0 / jnp.sqrt(16.0)
    w1 = jax.random.uniform(k1, (input_size, HIDDEN), jnp.float32, -bound1, bound1)
    b1 = jax.random.uniform(k2, (HIDDEN,), jnp.float32, -bound1, bound1)
    w2 = jax.random.uniform(k3, (HIDDEN, N_OUT), jnp.float32, -bound2, bound2)
    b2 = jax.random.uniform(k4, (N_OUT,), jnp.float32, -bound2, bound2)
    return w1, b1, w2, b2


def _ref_forward(x, w1, b1, w2, b2, use_bf16):
    """Pure-JAX reference with the same casting scheme as the kernel."""
    cdtype = jnp.bfloat16 if use_bf16 else jnp.float32
    h = jnp.dot(x.astype(cdtype), w1.astype(cdtype),
                preferred_element_type=jnp.float32) + b1.reshape(1, HIDDEN)
    h = jnp.maximum(h, 0.0)
    out = jnp.dot(h.astype(cdtype), w2.astype(cdtype),
                  preferred_element_type=jnp.float32) + b2.reshape(1, N_OUT)
    return out


if __name__ == "__main__":
    key = jax.random.PRNGKey(0)
    kx, kp, kx2 = jax.random.split(key, 3)

    input_size = 32
    w1, b1, w2, b2 = init_params(kp, input_size)

    # Small-shape check (batch=8).
    batch = 8
    x = jax.random.normal(kx, (batch, input_size), jnp.float32)
    out = activity_model_forward(x, w1, b1, w2, b2)
    out = jax.block_until_ready(out)
    assert out.shape == (batch, N_OUT)

    ref_bf16 = _ref_forward(x, w1, b1, w2, b2, use_bf16=True)
    ref_f32 = jnp.maximum(x @ w1 + b1, 0.0) @ w2 + b2
    assert jnp.allclose(out, ref_bf16, atol=1e-3, rtol=1e-3)
    assert jnp.allclose(out, ref_f32, atol=5e-2, rtol=5e-2)

    # Second check: multi-step grid + ragged batch tail (B % TILE_B != 0).
    batch2 = 200
    x2 = jax.random.normal(kx2, (batch2, input_size), jnp.float32)
    out2 = activity_model_forward(x2, w1, b1, w2, b2, tile_b=128)
    out2 = jax.block_until_ready(out2)
    assert out2.shape == (batch2, N_OUT)
    ref2 = _ref_forward(x2, w1, b1, w2, b2, use_bf16=True)
    assert jnp.allclose(out2, ref2, atol=1e-3, rtol=1e-3)

    print("KERNEL_OK")
</pallas_src>

<mosaic_0001>
module attributes {stable_mosaic.version = 11 : i64} {
  func.func @mlp_kernel(%arg0: i32, %arg1: memref<8x32xbf16, #tpu.memory_space<vmem>>, %arg2: memref<32x16xbf16, #tpu.memory_space<vmem>>, %arg3: memref<1x16xf32, #tpu.memory_space<vmem>>, %arg4: memref<16x128xbf16, #tpu.memory_space<vmem>>, %arg5: memref<1x128xf32, #tpu.memory_space<vmem>>, %arg6: memref<8x128xf32, #tpu.memory_space<vmem>>) attributes {dimension_semantics = [#tpu.dimension_semantics<parallel>], iteration_bounds = array<i64: 1>, scalar_prefetch = 0 : i64, scratch_operands = 0 : i64, tpu.core_type = #tpu.core_type<tc>, window_params = [{transform_indices = @transform_0, window_bounds = array<i64: 8, 32>}, {pipeline_mode = #tpu.pipeline_mode<synchronous>, transform_indices = @transform_1, window_bounds = array<i64: 32, 16>}, {pipeline_mode = #tpu.pipeline_mode<synchronous>, transform_indices = @transform_2, window_bounds = array<i64: 1, 16>}, {pipeline_mode = #tpu.pipeline_mode<synchronous>, transform_indices = @transform_3, window_bounds = array<i64: 16, 128>}, {pipeline_mode = #tpu.pipeline_mode<synchronous>, transform_indices = @transform_4, window_bounds = array<i64: 1, 128>}, {transform_indices = @transform_5, window_bounds = array<i64: 8, 128>}]} {
    %c0 = arith.constant 0 : index
    %c0_0 = arith.constant 0 : index
    %0 = vector.load %arg1[%c0, %c0_0] : memref<8x32xbf16, #tpu.memory_space<vmem>>, vector<8x32xbf16>
    %c0_1 = arith.constant 0 : index
    %c0_2 = arith.constant 0 : index
    %1 = vector.load %arg2[%c0_1, %c0_2] : memref<32x16xbf16, #tpu.memory_space<vmem>>, vector<32x16xbf16>
    %cst = arith.constant dense<0.000000e+00> : vector<8x16xf32>
    %2 = tpu.matmul %0, %1, %cst {dimension_numbers = #tpu.dot_dimension_numbers<[1], [0], [0], [1], [0, 0, 1, 1], [], []>} : vector<8x32xbf16>, vector<32x16xbf16>, vector<8x16xf32> -> vector<8x16xf32>
    %c0_3 = arith.constant 0 : index
    %c0_4 = arith.constant 0 : index
    %3 = vector.load %arg3[%c0_3, %c0_4] : memref<1x16xf32, #tpu.memory_space<vmem>>, vector<1x16xf32>
    %4 = vector.broadcast %3 : vector<1x16xf32> to vector<8x16xf32>
    %5 = arith.addf %2, %4 : vector<8x16xf32>
    %cst_5 = arith.constant 0.000000e+00 : f32
    %6 = vector.broadcast %cst_5 : f32 to vector<8x16xf32>
    %7 = arith.maximumf %5, %6 : vector<8x16xf32>
    %8 = arith.truncf %7 : vector<8x16xf32> to vector<8x16xbf16>
    %c0_6 = arith.constant 0 : index
    %c0_7 = arith.constant 0 : index
    %9 = vector.load %arg4[%c0_6, %c0_7] : memref<16x128xbf16, #tpu.memory_space<vmem>>, vector<16x128xbf16>
    %cst_8 = arith.constant dense<0.000000e+00> : vector<8x128xf32>
    %10 = tpu.matmul %8, %9, %cst_8 {dimension_numbers = #tpu.dot_dimension_numbers<[1], [0], [0], [1], [0, 0, 1, 1], [], []>} : vector<8x16xbf16>, vector<16x128xbf16>, vector<8x128xf32> -> vector<8x128xf32>
    %c0_9 = arith.constant 0 : index
    %c0_10 = arith.constant 0 : index
    %11 = vector.load %arg5[%c0_9, %c0_10] : memref<1x128xf32, #tpu.memory_space<vmem>>, vector<1x128xf32>
    %12 = vector.broadcast %11 : vector<1x128xf32> to vector<8x128xf32>
    %13 = arith.addf %10, %12 : vector<8x128xf32>
    %c0_11 = arith.constant 0 : index
    %c0_12 = arith.constant 0 : index
    %14 = vector.load %arg6[%c0_11, %c0_12] : memref<8x128xf32, #tpu.memory_space<vmem>>, vector<8x128xf32>
    tpu.vector_store %arg6[%c0_11, %c0_12], %13 {strides = array<i32>} : memref<8x128xf32, #tpu.memory_space<vmem>>, vector<8x128xf32>,
    return
  }
  func.func @transform_0(%arg0: i32) -> (i32, i32) {
    %c0_i32 = arith.constant 0 : i32
    %c0_i32_0 = arith.constant 0 : i32
    return %arg0, %c0_i32 : i32, i32
  }
  func.func @transform_1(%arg0: i32) -> (i32, i32) {
    %c0_i32 = arith.constant 0 : i32
    %c0_i32_0 = arith.constant 0 : i32
    %c0_i32_1 = arith.constant 0 : i32
    return %c0_i32, %c0_i32_0 : i32, i32
  }
  func.func @transform_2(%arg0: i32) -> (i32, i32) {
    %c0_i32 = arith.constant 0 : i32
    %c0_i32_0 = arith.constant 0 : i32
    %c0_i32_1 = arith.constant 0 : i32
    return %c0_i32, %c0_i32_0 : i32, i32
  }
  func.func @transform_3(%arg0: i32) -> (i32, i32) {
    %c0_i32 = arith.constant 0 : i32
    %c0_i32_0 = arith.constant 0 : i32
    %c0_i32_1 = arith.constant 0 : i32
    return %c0_i32, %c0_i32_0 : i32, i32
  }
  func.func @transform_4(%arg0: i32) -> (i32, i32) {
    %c0_i32 = arith.constant 0 : i32
    %c0_i32_0 = arith.constant 0 : i32
    %c0_i32_1 = arith.constant 0 : i32
    return %c0_i32, %c0_i32_0 : i32, i32
  }
  func.func @transform_5(%arg0: i32) -> (i32, i32) {
    %c0_i32 = arith.constant 0 : i32
    %c0_i32_0 = arith.constant 0 : i32
    return %arg0, %c0_i32 : i32, i32
  }
}

</mosaic_0001>

<llo_original>
// kernel: tpu_custom_call.1
$region0: #{tpu_custom_call.1}
  #allocation0 [shape = 'u32[]', space=smem, size = 0x4, offset = 0x4, fixed_abs, tag = 'smem constant byte address 0x4 - core index']
  #allocation1 [shape = 'u32[72,128]{1,0:T(1,128)}', space=vmem, size = 0x9000, scoped, tag = 'internal scratch']
  %s0 = inlined_call_operand.vmem [shape: bf16[8,32], index: 0, kind: input, shape index: {}]
  %s1 = inlined_call_operand.vmem [shape: bf16[32,16], index: 1, kind: input, shape index: {}]
  %s2 = inlined_call_operand.vmem [shape: f32[1,16], index: 2, kind: input, shape index: {}]
  %s3 = inlined_call_operand.vmem [shape: bf16[16,128], index: 3, kind: input, shape index: {}]
  %s4 = inlined_call_operand.vmem [shape: f32[1,128], index: 4, kind: input, shape index: {}]
  %s5 = inlined_call_operand.hbm [shape: f32[8,128], index: 5, kind: output, shape index: {}]
  %s6 = sld [smem:[#allocation0]]
  $region30: #{tpu_custom_call.1} parent=0
    _
  %s8 = ssub.s32 1, %s6
  %s9 = scalar_select 0, %s8, %s6
  $region1: #{tpu_custom_call.1} parent=0
    #allocation2 [shape = 'u8[4096]{0}', space=vmem, size = 0x1000, scoped, tag = 'output window, operand 0, single buffered']
    #allocation3 [shape = 's32[1]{0}', space=sflag, size = 0x4, scoped, tag = 'scoped memory for tpu_custom_call.1']
    %10 = vsyncpa [#allocation3], 0
    // Predicated region
    $region2: #{tpu_custom_call.1} parent=1 // pred_check
      _
    $region3: #{tpu_custom_call.1} parent=1 // pred_check_branch
      %12 = sbr.rel (0) target = $region5
    $region4: #{tpu_custom_call.1} parent=1 // pred_region
      _
    $region5: #{tpu_custom_call.1} parent=1 // pred_fallthru
      _
    // Predicated region
    $region6: #{tpu_custom_call.1} parent=1 // pred_check
      _
    $region7: #{tpu_custom_call.1} parent=1 // pred_check_branch
      %14 = sbr.rel (0) target = $region9
    $region8: #{tpu_custom_call.1} parent=1 // pred_region
      _
    $region9: #{tpu_custom_call.1} parent=1 // pred_fallthru
      _
    // Predicated region
    $region10: #{tpu_custom_call.1} parent=1 // pred_check
      _
    $region11: #{tpu_custom_call.1} parent=1 // pred_check_branch
      %16 = sbr.rel (0) target = $region13
    $region12: #{tpu_custom_call.1} parent=1 // pred_region
      _
    $region13: #{tpu_custom_call.1} parent=1 // pred_fallthru
      _
    // Predicated region
    $region14: #{tpu_custom_call.1} parent=1 // pred_check
      _
    $region15: #{tpu_custom_call.1} parent=1 // pred_check_branch
      %18 = sbr.rel (0) target = $region17
    $region16: #{tpu_custom_call.1} parent=1 // pred_region
      _
    $region17: #{tpu_custom_call.1} parent=1 // pred_fallthru
      _
    // Predicated region
    $region18: #{tpu_custom_call.1} parent=1 // pred_check
      _
    $region19: #{tpu_custom_call.1} parent=1 // pred_check_branch
      %20 = sbr.rel (0) target = $region21
    $region20: #{tpu_custom_call.1} parent=1 // pred_region
      _
    $region21: #{tpu_custom_call.1} parent=1 // pred_fallthru
      _
    %v22 = vld [vmem:[%s0] sm:$0xf]
    %v23 = vld [vmem:[%s1] sm:$0xf]
    %v24 = vld [vmem:[%s1 + $0x4] sm:$0xf]
    %v25 = vld [vmem:[%s1 + $0x8] sm:$0xf]
    %v26 = vld [vmem:[%s1 + $0xc] sm:$0xf]
    %v27 = vld [vmem:[%s2] sm:$0x1]
    %v29 = vperm.slane %v27, 0
    %v35 = vunpack.c.l.b16 %v23
    %v36 = vunpack.c.l.b16 %v24
    %v37 = vunpack.c.l.b16 %v25
    %v38 = vunpack.c.l.b16 %v26
    %v39 = vpack.c.b16 %v36, %v35
    %v40 = vpack.c.b16 %v38, %v37
    %vm43 = vcmask 261120
    %v45 = vsel %vm43, %v22, 0
    %47 = vmatpush.bf16.msra.mxu0 0
    %48 = vmatpush.bf16.msra.mxu0 0
    %49 = vmatpush.bf16.msra.mxu0 0
    %50 = vmatpush.bf16.msra.mxu0 0
    %51 = vmatpush.bf16.msra.mxu0 0
    %52 = vmatpush.bf16.msra.mxu0 0
    %53 = vmatpush.bf16.msra.mxu0 %v40
    %54 = vmatpush.bf16.msra.mxu0 %v39
    %55 = vmatmul.bf16.gmra.mxu0 %v45
    %v56 = vpop.f32.mrf.mxu0
    %v57 = vadd.f32 %v29, %v56
    %v58 = vpop.f32.mrf.mxu0
    %59 = vdwg.mxu0
    %v60 = vmax.f32 %v57, 0.0
    %v61 = vpack.c.bf16 %v60, %v60
    %v62 = vld [vmem:[%s3] sm:$0xf]
    %v63 = vld [vmem:[%s3 + $0x4] sm:$0xf]
    %v64 = vld [vmem:[%s4] sm:$0x1]
    %v66 = vperm.slane %v64, 0
    %v70 = vunpack.c.l.b16 %v62
    %v71 = vunpack.c.l.b16 %v63
    %v72 = vpack.c.b16 %v71, %v70
    %vm74 = vcmask 130048
    %v76 = vsel %vm74, %v61, 0
    %78 = vmatpush.bf16.msra.mxu0 0
    %79 = vmatpush.bf16.msra.mxu0 0
    %80 = vmatpush.bf16.msra.mxu0 0
    %81 = vmatpush.bf16.msra.mxu0 0
    %82 = vmatpush.bf16.msra.mxu0 0
    %83 = vmatpush.bf16.msra.mxu0 0
    %84 = vmatpush.bf16.msra.mxu0 0
    %85 = vmatpush.bf16.msra.mxu0 %v72
    %86 = vmatmul.bf16.gmra.mxu0 %v76
    %v87 = vpop.f32.mrf.mxu0
    %v88 = vadd.f32 %v66, %v87
    %v89 = vpop.f32.mrf.mxu0
    %90 = vdwg.mxu0
    %91 = vst [vmem:[#allocation2] sm:$0xff] %v88
    // Predicated region
    $region22: #{tpu_custom_call.1} parent=1 // pred_check
      _
    $region23: #{tpu_custom_call.1} parent=1 // pred_check_branch
      %93 = sbr.rel (0) target = $region25
    $region24: #{tpu_custom_call.1} parent=1 // pred_region
      %95 = vsyncadd [#allocation3], 0
      %s97 = sshll.u32 [#allocation2], 4
      %s98 = int_to_ptr.vmem [resolvable:$true] %s97
      %s99 = sshll.u32 %s5, 4
      %s100 = int_to_ptr.hbm [resolvable:$true] %s99
      %102 = dma.vmem_to_hbm [thread:$0]  %s98, 128, %s100, [#allocation3]
    $region25: #{tpu_custom_call.1} parent=1 // pred_fallthru
      _
    // Predicated region
    $region26: #{tpu_custom_call.1} parent=1 // pred_check
      _
    $region27: #{tpu_custom_call.1} parent=1 // pred_check_branch
      %104 = sbr.rel (0) target = $region29
    $region28: #{tpu_custom_call.1} parent=1 // pred_region
      %106 = dma.done [#allocation3], 128
    $region29: #{tpu_custom_call.1} parent=1 // pred_fallthru
      _
    %107 = vsyncpa [#allocation3], 1

</llo_original>
